<compile_context>
chip_gen: v5e
topology: v5e:2x2
jax: 0.10.0
libtpu: 0.0.40
codegen_flags: <defaults>
</compile_context>

<pallas_src>
import math
from functools import partial

import jax
import jax.numpy as jnp
from jax.experimental import pallas as pl
from jax.experimental.pallas import tpu as pltpu


def _round_up(x, m):
    return ((x + m - 1) // m) * m


def _choose_batch_tile(batch, max_tile=512):
    """Batch tile: multiple of 8 sublanes, >=2 grid steps whenever the batch
    allows (v7x megacore), as tall as possible (<= max_tile) to amortize the
    per-grid-step pipeline overhead."""
    b8 = _round_up(batch, 8)
    if b8 <= 8:
        return 8
    half = _round_up((batch + 1) // 2, 8)
    return min(half, max_tile, b8)


def _fused_mlp_kernel(x_ref, *refs, num_layers):
    """x -> Linear -> (ReLU -> Linear) x (num_layers-1), all in VMEM.

    Weights are (IN, OUT) bf16 with the 1/sqrt(fan_in) scale folded in, so the
    MXU consumes them directly; accumulation / bias-add / ReLU stay in f32.
    """
    o_ref = refs[-1]
    wb_refs = refs[:-1]

    h = x_ref[...].astype(jnp.float32)
    for i in range(num_layers):                 # static unroll over layers
        if i > 0:
            h = jnp.maximum(h, 0.0)             # ReLU in f32 (v5e: no bf16 VPU)
        w = wb_refs[2 * i][...]                 # (IN_pad, OUT_pad) bf16, pre-scaled
        b = wb_refs[2 * i + 1][...]             # (1, OUT_pad) f32
        h = jnp.dot(h.astype(w.dtype), w, preferred_element_type=jnp.float32) + b
    o_ref[...] = h.astype(o_ref.dtype)


def _resident_spec(shape, single_buffer):
    """BlockSpec for a parameter that is resident across all grid steps."""
    index_map = lambda i: (0,) * len(shape)
    if single_buffer:
        # Constant index map -> DMA'd once; one VMEM buffer is enough.
        return pl.BlockSpec(shape, index_map, pipeline_mode=pl.Buffered(1))
    return pl.BlockSpec(shape, index_map)


def fused_mlp(x, weights_t, biases, *, single_buffer_weights=True,
              max_batch_tile=512):
    """Run the fused MLP.

    x:          (B, IN0) f32, natural (unpadded) feature width.
    weights_t:  tuple of (IN_pad_i, OUT_pad_i) bf16 — scaled, transposed, padded.
    biases:     tuple of (1, OUT_pad_i) f32 — zero-padded.
    Returns the padded output (B_pad, OUT_pad_last); caller slices.
    """
    batch, in_dim = x.shape
    num_layers = len(weights_t)
    in_p = weights_t[0].shape[0]          # first-layer K (= in_dim rounded to 8)
    out_p = weights_t[-1].shape[1]        # last-layer OUT (rounded to 128)

    tb = _choose_batch_tile(batch, max_batch_tile)
    b_pad = _round_up(batch, tb)

    if (b_pad, in_p) != (batch, in_dim):
        x_in = jnp.zeros((b_pad, in_p), x.dtype).at[:batch, :in_dim].set(x)
    else:
        x_in = x                          # no wrapper-side copy needed

    in_specs = [pl.BlockSpec((tb, in_p), lambda i: (i, 0))]
    args = [x_in]
    for w, b in zip(weights_t, biases):
        in_specs.append(_resident_spec(w.shape, single_buffer_weights))
        in_specs.append(_resident_spec(b.shape, single_buffer_weights))
        args.append(w)
        args.append(b)

    # Cost estimate: 2*M*K*N flops per layer; bytes = params + x + out.
    flops = 2 * b_pad * sum(w.shape[0] * w.shape[1] for w in weights_t)
    bytes_accessed = (
        x_in.size * x_in.dtype.itemsize
        + sum(int(w.size) * w.dtype.itemsize for w in weights_t)
        + sum(int(b.size) * b.dtype.itemsize for b in biases)
        + b_pad * out_p * 4
    )

    # Explicit VMEM budget; cap at 64 MiB so the identical kernel fits v7x.
    wb_bufs = 1 if single_buffer_weights else 2
    resident = wb_bufs * sum(int(a.size) * a.dtype.itemsize for a in args[1:])
    io_tiles = 2 * tb * (in_p + out_p) * 4
    act_bytes = 4 * tb * max(w.shape[1] for w in weights_t) * 4
    vmem_limit = int(min(max(2 * (resident + io_tiles + act_bytes), 32 << 20),
                         64 << 20))
    # TODO(synk): if real widths push `resident` past ~64 MiB, switch to
    # per-layer K/OUT tiling (pltpu.emit_pipeline) instead of full residency.

    kernel = partial(_fused_mlp_kernel, num_layers=num_layers)
    return pl.pallas_call(
        kernel,
        out_shape=jax.ShapeDtypeStruct((b_pad, out_p), jnp.float32),
        grid_spec=pltpu.PrefetchScalarGridSpec(
            num_scalar_prefetch=0,
            grid=(b_pad // tb,),
            in_specs=in_specs,
            out_specs=pl.BlockSpec((tb, out_p), lambda i: (i, 0)),
        ),
        compiler_params=pltpu.CompilerParams(
            dimension_semantics=("parallel",),   # shard batch tiles across TCs
            vmem_limit_bytes=vmem_limit,
        ),
        cost_estimate=pl.CostEstimate(
            flops=flops, transcendentals=0, bytes_accessed=bytes_accessed),
    )(*args)


@partial(jax.jit,
         static_argnames=("num_outputs", "single_buffer_weights",
                          "max_batch_tile"))
def _forward(x, weights_t, biases, *, num_outputs, single_buffer_weights,
             max_batch_tile=512):
    out = fused_mlp(x, weights_t, biases,
                    single_buffer_weights=single_buffer_weights,
                    max_batch_tile=max_batch_tile)
    return out[: x.shape[0], :num_outputs]


class PallasNN:
    """JAX/Pallas re-implementation of the PyTorch NN module's forward pass."""

    def __init__(self, key, dim, widths, num_outputs=1):
        self.dim = dim
        self.widths = list(widths)
        self.num_outputs = num_outputs

        # Deterministic init: normal(0, 1) for all weights & biases, matching
        # torch.nn.init.normal_ defaults (PyTorch layout (OUT, IN)).
        keys = jax.random.split(key, 2 * (1 + len(self.widths)))
        k_iter = iter(keys)

        self.params = []
        w = jax.random.normal(next(k_iter), (self.widths[0], dim), jnp.float32)
        b = jax.random.normal(next(k_iter), (self.widths[0],), jnp.float32)
        self.params.append((w, b))
        for in_w, out_w in zip(self.widths, self.widths[1:] + [num_outputs]):
            w = jax.random.normal(next(k_iter), (out_w, in_w), jnp.float32)
            b = jax.random.normal(next(k_iter), (out_w,), jnp.float32)
            self.params.append((w, b))

        # Kernel-side params: fold 1/sqrt(fan_in) into W, transpose to
        # (IN, OUT), cast to bf16 (MXU-native), pad OUT dims to multiples of
        # 128 (lane-dense) and only the first layer's IN dim to 8 (matches the
        # natural x feature width; later IN dims equal the previous OUT pad).
        scales = [1.0 / math.sqrt(dim)] + [1.0 / math.sqrt(w_) for w_ in self.widths]
        kernel_weights, kernel_biases = [], []
        for li, ((w, b), s) in enumerate(zip(self.params, scales)):
            out_d, in_d = w.shape
            in_pad = _round_up(in_d, 8) if li == 0 else _round_up(in_d, 128)
            out_pad = _round_up(out_d, 128)
            wt = (jnp.zeros((in_pad, out_pad), jnp.float32)
                  .at[:in_d, :out_d].set((w * s).T))
            kernel_weights.append(wt.astype(jnp.bfloat16))
            kernel_biases.append(
                jnp.zeros((1, out_pad), jnp.float32).at[0, :out_d].set(b))
        self.kernel_weights = tuple(kernel_weights)
        self.kernel_biases = tuple(kernel_biases)

        self._single_buffer = hasattr(pl, "Buffered")
        self._validated = False

    def __call__(self, inputs):
        args = (inputs, self.kernel_weights, self.kernel_biases)
        kwargs = dict(num_outputs=self.num_outputs)
        if not self._validated:
            try:
                out = _forward(*args,
                               single_buffer_weights=self._single_buffer,
                               **kwargs)
                jax.block_until_ready(out)
            except Exception:
                if not self._single_buffer:
                    raise
                # pl.Buffered(1) unsupported on this build: fall back to the
                # default double-buffered weight specs.
                self._single_buffer = False
                out = _forward(*args, single_buffer_weights=False, **kwargs)
            self._validated = True
            return out
        return _forward(*args, single_buffer_weights=self._single_buffer,
                        **kwargs)


def reference_forward(model, inputs):
    """Pure-JAX f32 reference mirroring the PyTorch forward exactly."""
    w0, b0 = model.params[0]
    res = (inputs / math.sqrt(model.dim)) @ w0.T + b0
    for (w, b), width in zip(model.params[1:], model.widths):
        res = jnp.maximum(res, 0.0)
        res = (res / math.sqrt(width)) @ w.T + b
    return res


def matched_precision_reference(model, inputs):
    """Pure-JAX reference using the exact kernel-side params / dtypes
    (bf16 operands, f32 accumulation) — should match the kernel ~bitwise."""
    in_p = model.kernel_weights[0].shape[0]
    batch, in_dim = inputs.shape
    h = jnp.zeros((batch, in_p), jnp.float32).at[:, :in_dim].set(inputs)
    for i, (w, b) in enumerate(zip(model.kernel_weights, model.kernel_biases)):
        if i > 0:
            h = jnp.maximum(h, 0.0)
        h = jnp.dot(h.astype(w.dtype), w, preferred_element_type=jnp.float32) + b
    return h[:, :model.num_outputs]


if __name__ == "__main__":
    key = jax.random.PRNGKey(0)
    k_params, k_x = jax.random.split(key)

    batch = 16          # two 8-row batch tiles -> 2-step "parallel" grid
    dim = 32
    widths = [64, 32]
    num_outputs = 8

    model = PallasNN(k_params, dim=dim, widths=widths, num_outputs=num_outputs)
    x = jax.random.normal(k_x, (batch, dim), jnp.float32)

    out = jax.block_until_ready(model(x))
    assert out.shape == (batch, num_outputs), out.shape

    # Tight check against a pure-JAX run of the same bf16/f32-accum math.
    ref_m = matched_precision_reference(model, x)
    assert jnp.allclose(out, ref_m, atol=2e-3, rtol=2e-3), (
        float(jnp.max(jnp.abs(out - ref_m))))

    # Loose check against the full-f32 PyTorch-equivalent math (bf16 weights
    # add ~0.4% relative rounding per layer).
    ref_f = reference_forward(model, x)
    assert jnp.allclose(out, ref_f, atol=0.25, rtol=0.05), (
        float(jnp.max(jnp.abs(out - ref_f))))

    print("KERNEL_OK")
</pallas_src>

<mosaic_0001>
module attributes {stable_mosaic.version = 11 : i64} {
  func.func @_fused_mlp_kernel(%arg0: i32, %arg1: memref<8x32xf32, #tpu.memory_space<vmem>>, %arg2: memref<32x128xbf16, #tpu.memory_space<vmem>>, %arg3: memref<1x128xf32, #tpu.memory_space<vmem>>, %arg4: memref<128x128xbf16, #tpu.memory_space<vmem>>, %arg5: memref<1x128xf32, #tpu.memory_space<vmem>>, %arg6: memref<128x128xbf16, #tpu.memory_space<vmem>>, %arg7: memref<1x128xf32, #tpu.memory_space<vmem>>, %arg8: memref<8x128xf32, #tpu.memory_space<vmem>>) attributes {dimension_semantics = [#tpu.dimension_semantics<parallel>], iteration_bounds = array<i64: 2>, scalar_prefetch = 0 : i64, scratch_operands = 0 : i64, tpu.core_type = #tpu.core_type<tc>, window_params = [{transform_indices = @transform_0, window_bounds = array<i64: 8, 32>}, {pipeline_mode = #tpu.pipeline_mode<synchronous>, transform_indices = @transform_1, window_bounds = array<i64: 32, 128>}, {pipeline_mode = #tpu.pipeline_mode<synchronous>, transform_indices = @transform_2, window_bounds = array<i64: 1, 128>}, {pipeline_mode = #tpu.pipeline_mode<synchronous>, transform_indices = @transform_3, window_bounds = array<i64: 128, 128>}, {pipeline_mode = #tpu.pipeline_mode<synchronous>, transform_indices = @transform_4, window_bounds = array<i64: 1, 128>}, {pipeline_mode = #tpu.pipeline_mode<synchronous>, transform_indices = @transform_5, window_bounds = array<i64: 128, 128>}, {pipeline_mode = #tpu.pipeline_mode<synchronous>, transform_indices = @transform_6, window_bounds = array<i64: 1, 128>}, {transform_indices = @transform_7, window_bounds = array<i64: 8, 128>}]} {
    %c0 = arith.constant 0 : index
    %c0_0 = arith.constant 0 : index
    %0 = vector.load %arg1[%c0, %c0_0] : memref<8x32xf32, #tpu.memory_space<vmem>>, vector<8x32xf32>
    %c0_1 = arith.constant 0 : index
    %c0_2 = arith.constant 0 : index
    %1 = vector.load %arg2[%c0_1, %c0_2] : memref<32x128xbf16, #tpu.memory_space<vmem>>, vector<32x128xbf16>
    %c0_3 = arith.constant 0 : index
    %c0_4 = arith.constant 0 : index
    %2 = vector.load %arg3[%c0_3, %c0_4] : memref<1x128xf32, #tpu.memory_space<vmem>>, vector<1x128xf32>
    %3 = arith.truncf %0 : vector<8x32xf32> to vector<8x32xbf16>
    %cst = arith.constant dense<0.000000e+00> : vector<8x128xf32>
    %4 = tpu.matmul %3, %1, %cst {dimension_numbers = #tpu.dot_dimension_numbers<[1], [0], [0], [1], [0, 0, 1, 1], [], []>} : vector<8x32xbf16>, vector<32x128xbf16>, vector<8x128xf32> -> vector<8x128xf32>
    %5 = vector.broadcast %2 : vector<1x128xf32> to vector<8x128xf32>
    %6 = arith.addf %4, %5 : vector<8x128xf32>
    %cst_5 = arith.constant 0.000000e+00 : f32
    %7 = vector.broadcast %cst_5 : f32 to vector<8x128xf32>
    %8 = arith.maximumf %6, %7 : vector<8x128xf32>
    %c0_6 = arith.constant 0 : index
    %c0_7 = arith.constant 0 : index
    %9 = vector.load %arg4[%c0_6, %c0_7] : memref<128x128xbf16, #tpu.memory_space<vmem>>, vector<128x128xbf16>
    %c0_8 = arith.constant 0 : index
    %c0_9 = arith.constant 0 : index
    %10 = vector.load %arg5[%c0_8, %c0_9] : memref<1x128xf32, #tpu.memory_space<vmem>>, vector<1x128xf32>
    %11 = arith.truncf %8 : vector<8x128xf32> to vector<8x128xbf16>
    %cst_10 = arith.constant dense<0.000000e+00> : vector<8x128xf32>
    %12 = tpu.matmul %11, %9, %cst_10 {dimension_numbers = #tpu.dot_dimension_numbers<[1], [0], [0], [1], [0, 0, 1, 1], [], []>} : vector<8x128xbf16>, vector<128x128xbf16>, vector<8x128xf32> -> vector<8x128xf32>
    %13 = vector.broadcast %10 : vector<1x128xf32> to vector<8x128xf32>
    %14 = arith.addf %12, %13 : vector<8x128xf32>
    %cst_11 = arith.constant 0.000000e+00 : f32
    %15 = vector.broadcast %cst_11 : f32 to vector<8x128xf32>
    %16 = arith.maximumf %14, %15 : vector<8x128xf32>
    %c0_12 = arith.constant 0 : index
    %c0_13 = arith.constant 0 : index
    %17 = vector.load %arg6[%c0_12, %c0_13] : memref<128x128xbf16, #tpu.memory_space<vmem>>, vector<128x128xbf16>
    %c0_14 = arith.constant 0 : index
    %c0_15 = arith.constant 0 : index
    %18 = vector.load %arg7[%c0_14, %c0_15] : memref<1x128xf32, #tpu.memory_space<vmem>>, vector<1x128xf32>
    %19 = arith.truncf %16 : vector<8x128xf32> to vector<8x128xbf16>
    %cst_16 = arith.constant dense<0.000000e+00> : vector<8x128xf32>
    %20 = tpu.matmul %19, %17, %cst_16 {dimension_numbers = #tpu.dot_dimension_numbers<[1], [0], [0], [1], [0, 0, 1, 1], [], []>} : vector<8x128xbf16>, vector<128x128xbf16>, vector<8x128xf32> -> vector<8x128xf32>
    %21 = vector.broadcast %18 : vector<1x128xf32> to vector<8x128xf32>
    %22 = arith.addf %20, %21 : vector<8x128xf32>
    %c0_17 = arith.constant 0 : index
    %c0_18 = arith.constant 0 : index
    %23 = vector.load %arg8[%c0_17, %c0_18] : memref<8x128xf32, #tpu.memory_space<vmem>>, vector<8x128xf32>
    tpu.vector_store %arg8[%c0_17, %c0_18], %22 {strides = array<i32>} : memref<8x128xf32, #tpu.memory_space<vmem>>, vector<8x128xf32>,
    return
  }
  func.func @transform_0(%arg0: i32) -> (i32, i32) {
    %c0_i32 = arith.constant 0 : i32
    %c0_i32_0 = arith.constant 0 : i32
    return %arg0, %c0_i32 : i32, i32
  }
  func.func @transform_1(%arg0: i32) -> (i32, i32) {
    %c0_i32 = arith.constant 0 : i32
    %c0_i32_0 = arith.constant 0 : i32
    %c0_i32_1 = arith.constant 0 : i32
    return %c0_i32, %c0_i32_0 : i32, i32
  }
  func.func @transform_2(%arg0: i32) -> (i32, i32) {
    %c0_i32 = arith.constant 0 : i32
    %c0_i32_0 = arith.constant 0 : i32
    %c0_i32_1 = arith.constant 0 : i32
    return %c0_i32, %c0_i32_0 : i32, i32
  }
  func.func @transform_3(%arg0: i32) -> (i32, i32) {
    %c0_i32 = arith.constant 0 : i32
    %c0_i32_0 = arith.constant 0 : i32
    %c0_i32_1 = arith.constant 0 : i32
    return %c0_i32, %c0_i32_0 : i32, i32
  }
  func.func @transform_4(%arg0: i32) -> (i32, i32) {
    %c0_i32 = arith.constant 0 : i32
    %c0_i32_0 = arith.constant 0 : i32
    %c0_i32_1 = arith.constant 0 : i32
    return %c0_i32, %c0_i32_0 : i32, i32
  }
  func.func @transform_5(%arg0: i32) -> (i32, i32) {
    %c0_i32 = arith.constant 0 : i32
    %c0_i32_0 = arith.constant 0 : i32
    %c0_i32_1 = arith.constant 0 : i32
    return %c0_i32, %c0_i32_0 : i32, i32
  }
  func.func @transform_6(%arg0: i32) -> (i32, i32) {
    %c0_i32 = arith.constant 0 : i32
    %c0_i32_0 = arith.constant 0 : i32
    %c0_i32_1 = arith.constant 0 : i32
    return %c0_i32, %c0_i32_0 : i32, i32
  }
  func.func @transform_7(%arg0: i32) -> (i32, i32) {
    %c0_i32 = arith.constant 0 : i32
    %c0_i32_0 = arith.constant 0 : i32
    return %arg0, %c0_i32 : i32, i32
  }
}

module attributes {stable_mosaic.version = 11 : i64} {
  func.func @_fused_mlp_kernel(%arg0: i32, %arg1: memref<8x32xf32, #tpu.memory_space<vmem>>, %arg2: memref<32x128xbf16, #tpu.memory_space<vmem>>, %arg3: memref<1x128xf32, #tpu.memory_space<vmem>>, %arg4: memref<128x128xbf16, #tpu.memory_space<vmem>>, %arg5: memref<1x128xf32, #tpu.memory_space<vmem>>, %arg6: memref<128x128xbf16, #tpu.memory_space<vmem>>, %arg7: memref<1x128xf32, #tpu.memory_space<vmem>>, %arg8: memref<8x128xf32, #tpu.memory_space<vmem>>) attributes {dimension_semantics = [#tpu.dimension_semantics<parallel>], iteration_bounds = array<i64: 2>, scalar_prefetch = 0 : i64, scratch_operands = 0 : i64, tpu.core_type = #tpu.core_type<tc>, window_params = [{transform_indices = @transform_0, window_bounds = array<i64: 8, 32>}, {pipeline_mode = #tpu.pipeline_mode<synchronous>, transform_indices = @transform_1, window_bounds = array<i64: 32, 128>}, {pipeline_mode = #tpu.pipeline_mode<synchronous>, transform_indices = @transform_2, window_bounds = array<i64: 1, 128>}, {pipeline_mode = #tpu.pipeline_mode<synchronous>, transform_indices = @transform_3, window_bounds = array<i64: 128, 128>}, {pipeline_mode = #tpu.pipeline_mode<synchronous>, transform_indices = @transform_4, window_bounds = array<i64: 1, 128>}, {pipeline_mode = #tpu.pipeline_mode<synchronous>, transform_indices = @transform_5, window_bounds = array<i64: 128, 128>}, {pipeline_mode = #tpu.pipeline_mode<synchronous>, transform_indices = @transform_6, window_bounds = array<i64: 1, 128>}, {transform_indices = @transform_7, window_bounds = array<i64: 8, 128>}]} {
    %c0 = arith.constant 0 : index
    %c0_0 = arith.constant 0 : index
    %0 = vector.load %arg1[%c0, %c0_0] : memref<8x32xf32, #tpu.memory_space<vmem>>, vector<8x32xf32>
    %c0_1 = arith.constant 0 : index
    %c0_2 = arith.constant 0 : index
    %1 = vector.load %arg2[%c0_1, %c0_2] : memref<32x128xbf16, #tpu.memory_space<vmem>>, vector<32x128xbf16>
    %c0_3 = arith.constant 0 : index
    %c0_4 = arith.constant 0 : index
    %2 = vector.load %arg3[%c0_3, %c0_4] : memref<1x128xf32, #tpu.memory_space<vmem>>, vector<1x128xf32>
    %3 = arith.truncf %0 : vector<8x32xf32> to vector<8x32xbf16>
    %cst = arith.constant dense<0.000000e+00> : vector<8x128xf32>
    %4 = tpu.matmul %3, %1, %cst {dimension_numbers = #tpu.dot_dimension_numbers<[1], [0], [0], [1], [0, 0, 1, 1], [], []>} : vector<8x32xbf16>, vector<32x128xbf16>, vector<8x128xf32> -> vector<8x128xf32>
    %5 = vector.broadcast %2 : vector<1x128xf32> to vector<8x128xf32>
    %6 = arith.addf %4, %5 : vector<8x128xf32>
    %cst_5 = arith.constant 0.000000e+00 : f32
    %7 = vector.broadcast %cst_5 : f32 to vector<8x128xf32>
    %8 = arith.maximumf %6, %7 : vector<8x128xf32>
    %c0_6 = arith.constant 0 : index
    %c0_7 = arith.constant 0 : index
    %9 = vector.load %arg4[%c0_6, %c0_7] : memref<128x128xbf16, #tpu.memory_space<vmem>>, vector<128x128xbf16>
    %c0_8 = arith.constant 0 : index
    %c0_9 = arith.constant 0 : index
    %10 = vector.load %arg5[%c0_8, %c0_9] : memref<1x128xf32, #tpu.memory_space<vmem>>, vector<1x128xf32>
    %11 = arith.truncf %8 : vector<8x128xf32> to vector<8x128xbf16>
    %cst_10 = arith.constant dense<0.000000e+00> : vector<8x128xf32>
    %12 = tpu.matmul %11, %9, %cst_10 {dimension_numbers = #tpu.dot_dimension_numbers<[1], [0], [0], [1], [0, 0, 1, 1], [], []>} : vector<8x128xbf16>, vector<128x128xbf16>, vector<8x128xf32> -> vector<8x128xf32>
    %13 = vector.broadcast %10 : vector<1x128xf32> to vector<8x128xf32>
    %14 = arith.addf %12, %13 : vector<8x128xf32>
    %cst_11 = arith.constant 0.000000e+00 : f32
    %15 = vector.broadcast %cst_11 : f32 to vector<8x128xf32>
    %16 = arith.maximumf %14, %15 : vector<8x128xf32>
    %c0_12 = arith.constant 0 : index
    %c0_13 = arith.constant 0 : index
    %17 = vector.load %arg6[%c0_12, %c0_13] : memref<128x128xbf16, #tpu.memory_space<vmem>>, vector<128x128xbf16>
    %c0_14 = arith.constant 0 : index
    %c0_15 = arith.constant 0 : index
    %18 = vector.load %arg7[%c0_14, %c0_15] : memref<1x128xf32, #tpu.memory_space<vmem>>, vector<1x128xf32>
    %19 = arith.truncf %16 : vector<8x128xf32> to vector<8x128xbf16>
    %cst_16 = arith.constant dense<0.000000e+00> : vector<8x128xf32>
    %20 = tpu.matmul %19, %17, %cst_16 {dimension_numbers = #tpu.dot_dimension_numbers<[1], [0], [0], [1], [0, 0, 1, 1], [], []>} : vector<8x128xbf16>, vector<128x128xbf16>, vector<8x128xf32> -> vector<8x128xf32>
    %21 = vector.broadcast %18 : vector<1x128xf32> to vector<8x128xf32>
    %22 = arith.addf %20, %21 : vector<8x128xf32>
    %c0_17 = arith.constant 0 : index
    %c0_18 = arith.constant 0 : index
    %23 = vector.load %arg8[%c0_17, %c0_18] : memref<8x128xf32, #tpu.memory_space<vmem>>, vector<8x128xf32>
    tpu.vector_store %arg8[%c0_17, %c0_18], %22 {strides = array<i32>} : memref<8x128xf32, #tpu.memory_space<vmem>>, vector<8x128xf32>,
    return
  }
  func.func @transform_0(%arg0: i32) -> (i32, i32) {
    %c0_i32 = arith.constant 0 : i32
    %c0_i32_0 = arith.constant 0 : i32
    return %arg0, %c0_i32 : i32, i32
  }
  func.func @transform_1(%arg0: i32) -> (i32, i32) {
    %c0_i32 = arith.constant 0 : i32
    %c0_i32_0 = arith.constant 0 : i32
    %c0_i32_1 = arith.constant 0 : i32
    return %c0_i32, %c0_i32_0 : i32, i32
  }
  func.func @transform_2(%arg0: i32) -> (i32, i32) {
    %c0_i32 = arith.constant 0 : i32
    %c0_i32_0 = arith.constant 0 : i32
    %c0_i32_1 = arith.constant 0 : i32
    return %c0_i32, %c0_i32_0 : i32, i32
  }
  func.func @transform_3(%arg0: i32) -> (i32, i32) {
    %c0_i32 = arith.constant 0 : i32
    %c0_i32_0 = arith.constant 0 : i32
    %c0_i32_1 = arith.constant 0 : i32
    return %c0_i32, %c0_i32_0 : i32, i32
  }
  func.func @transform_4(%arg0: i32) -> (i32, i32) {
    %c0_i32 = arith.constant 0 : i32
    %c0_i32_0 = arith.constant 0 : i32
    %c0_i32_1 = arith.constant 0 : i32
    return %c0_i32, %c0_i32_0 : i32, i32
  }
  func.func @transform_5(%arg0: i32) -> (i32, i32) {
    %c0_i32 = arith.constant 0 : i32
    %c0_i32_0 = arith.constant 0 : i32
    %c0_i32_1 = arith.constant 0 : i32
    return %c0_i32, %c0_i32_0 : i32, i32
  }
  func.func @transform_6(%arg0: i32) -> (i32, i32) {
    %c0_i32 = arith.constant 0 : i32
    %c0_i32_0 = arith.constant 0 : i32
    %c0_i32_1 = arith.constant 0 : i32
    return %c0_i32, %c0_i32_0 : i32, i32
  }
  func.func @transform_7(%arg0: i32) -> (i32, i32) {
    %c0_i32 = arith.constant 0 : i32
    %c0_i32_0 = arith.constant 0 : i32
    return %arg0, %c0_i32 : i32, i32
  }
}

</mosaic_0001>

<llo_original>
// kernel: _forward.1
$region0: #{_forward.1}
  #allocation0 [shape = 'u32[]', space=smem, size = 0x4, offset = 0x4, fixed_abs, tag = 'smem constant byte address 0x4 - core index']
  #allocation1 [shape = 'u32[72,128]{1,0:T(1,128)}', space=vmem, size = 0x9000, scoped, tag = 'internal scratch']
  %s0 = inlined_call_operand.hbm [shape: f32[16,32], index: 0, kind: input, shape index: {}]
  %s1 = inlined_call_operand.hbm [shape: bf16[32,128], index: 1, kind: input, shape index: {}]
  %s2 = inlined_call_operand.vmem [shape: f32[1,128], index: 2, kind: input, shape index: {}]
  %s3 = inlined_call_operand.hbm [shape: bf16[128,128], index: 3, kind: input, shape index: {}]
  %s4 = inlined_call_operand.vmem [shape: f32[1,128], index: 4, kind: input, shape index: {}]
  %s5 = inlined_call_operand.hbm [shape: bf16[128,128], index: 5, kind: input, shape index: {}]
  %s6 = inlined_call_operand.vmem [shape: f32[1,128], index: 6, kind: input, shape index: {}]
  %s7 = inlined_call_operand.vmem [shape: f32[16,128], index: 7, kind: output, shape index: {}]
  %s8 = sld [smem:[#allocation0]]
  $region77: #{_forward.1} parent=0
    _
  %s10 = ssub.s32 1, %s8
  %s11 = scalar_select 0, %s10, %s8
  $region1: #{_forward.1} parent=0
    #allocation2 [shape = 'u8[8192]{0}', space=vmem, size = 0x2000, scoped, tag = 'input window, operand 0']
    #allocation3 [shape = 's32[2]{0}', space=sflag, size = 0x8, scoped, tag = 'scoped memory for _forward.1']
    #allocation4 [shape = 'u8[8192]{0}', space=vmem, size = 0x2000, scoped, tag = 'input window, operand 1, single buffered']
    #allocation5 [shape = 's32[1]{0}', space=sflag, size = 0x4, scoped, tag = 'scoped memory for _forward.1']
    #allocation6 [shape = 'u8[32768]{0}', space=vmem, size = 0x8000, scoped, tag = 'input window, operand 3, single buffered']
    #allocation7 [shape = 'u8[32768]{0}', space=vmem, size = 0x8000, scoped, tag = 'input window, operand 5, single buffered']
    #allocation8 [shape = 's32[1]{0}', space=sflag, size = 0x4, scoped, tag = 'scoped memory for _forward.1']
    %12 = vsyncpa [#allocation3], 0
    %s13 = scalar_lea.sflag [#allocation3], 1
    %14 = vsyncpa %s13, 0
    %15 = vsyncpa [#allocation5], 0
    %16 = vsyncpa [#allocation8], 0
    loop: start=0, step=1, limit=4
    $region2: #{_forward.1} parent=1 // loop_pre_header
      _
    $region3: #{_forward.1} parent=1 // loop_header
      %s18 = sphi 0, %s22
      %p19 = scmp.ge.s32.totalorder %s18, 4
      %s28 = sphi 0, %s30
      %s31 = sphi 0, %s28
      %s32 = sphi 0, %s31
      %s48 = sphi 0, %s32
      %s52 = sphi 0, %s52
      %s54 = sphi 0, %s52
      %s55 = sphi 0, %s54
      %s69 = sphi 0, %s55
      %s73 = sphi 0, %s73
      %s75 = sphi 0, %s73
      %s76 = sphi 0, %s75
      %s90 = sphi 0, %s76
      %s94 = sphi 0, %s94
      %s96 = sphi 0, %s94
      %s97 = sphi 0, %s96
      %s111 = sphi 0, %s97
      %s115 = sphi 0, %s115
      %s117 = sphi 0, %s115
      %s118 = sphi 0, %s117
      %s132 = sphi 0, %s118
      %s136 = sphi 0, %s136
      %s138 = sphi 0, %s136
      %s139 = sphi 0, %s138
      %s153 = sphi 0, %s139
      %s157 = sphi 0, %s157
      %s159 = sphi 0, %s157
      %s160 = sphi 0, %s159
      %s174 = sphi 0, %s160
      %s180 = sphi 0, %s182
      %s183 = sphi 0, %s180
      %s184 = sphi 0, %s183
      %s200 = sphi 0, %s184
    $region4: #{_forward.1} parent=1 // loop_header_branch
      %21 = sbr.rel (%p19) target = $region8
    $region5: #{_forward.1} parent=1 // loop_body
      %s23 = ssub.s32 %s18, 1
      %s24 = ssub.s32 %s18, 2
      %s25 = sadd.s32 %s18, 1
      %s26 = ssub.s32 %s18, %s25
      %p27 = scmp.eq.s32.totalorder %s26, 0
      %s29 = sadd.s32 %s28, 1
      %s30 = scalar_select %p27, %s28, %s29
      %p33 = pneg %p27
      %p34 = scmp.eq.s32.totalorder %s18, 1
      %p35 = por %p33, %p34
      %p36 = scmp.ne.s32.totalorder %s28, %s31
      %p37 = scmp.eq.s32.totalorder %s18, 0
      %p38 = por %p36, %p37
      %p39 = scmp.ne.s32.totalorder %s28, %s31
      %p40 = scmp.eq.s32.totalorder %s23, 1
      %p41 = por %p39, %p40
      %p42 = scmp.ne.s32.totalorder %s31, %s32
      %p43 = scmp.eq.s32.totalorder %s23, 0
      %p44 = por %p42, %p43
      %p45 = scmp.ne.s32.totalorder %s31, %s32
      %p46 = scmp.eq.s32.totalorder %s24, 1
      %p47 = por %p45, %p46
      %p49 = scmp.ne.s32.totalorder %s32, %s48
      %p50 = scmp.eq.s32.totalorder %s24, 0
      %p51 = por %p49, %p50
      %s53 = sadd.s32 %s52, 1
      %p56 = scmp.eq.s32.totalorder %s18, 1
      %p57 = scmp.ne.s32.totalorder %s52, %s54
      %p58 = scmp.eq.s32.totalorder %s18, 0
      %p59 = por %p57, %p58
      %p60 = scmp.ne.s32.totalorder %s52, %s54
      %p61 = scmp.eq.s32.totalorder %s23, 1
      %p62 = por %p60, %p61
      %p63 = scmp.ne.s32.totalorder %s54, %s55
      %p64 = scmp.eq.s32.totalorder %s23, 0
      %p65 = por %p63, %p64
      %p66 = scmp.ne.s32.totalorder %s54, %s55
      %p67 = scmp.eq.s32.totalorder %s24, 1
      %p68 = por %p66, %p67
      %p70 = scmp.ne.s32.totalorder %s55, %s69
      %p71 = scmp.eq.s32.totalorder %s24, 0
      %p72 = por %p70, %p71
      %s74 = sadd.s32 %s73, 1
      %p77 = scmp.eq.s32.totalorder %s18, 1
      %p78 = scmp.ne.s32.totalorder %s73, %s75
      %p79 = scmp.eq.s32.totalorder %s18, 0
      %p80 = por %p78, %p79
      %p81 = scmp.ne.s32.totalorder %s73, %s75
      %p82 = scmp.eq.s32.totalorder %s23, 1
      %p83 = por %p81, %p82
      %p84 = scmp.ne.s32.totalorder %s75, %s76
      %p85 = scmp.eq.s32.totalorder %s23, 0
      %p86 = por %p84, %p85
      %p87 = scmp.ne.s32.totalorder %s75, %s76
      %p88 = scmp.eq.s32.totalorder %s24, 1
      %p89 = por %p87, %p88
      %p91 = scmp.ne.s32.totalorder %s76, %s90
      %p92 = scmp.eq.s32.totalorder %s24, 0
      %p93 = por %p91, %p92
      %s95 = sadd.s32 %s94, 1
      %p98 = scmp.eq.s32.totalorder %s18, 1
      %p99 = scmp.ne.s32.totalorder %s94, %s96
      %p100 = scmp.eq.s32.totalorder %s18, 0
      %p101 = por %p99, %p100
      %p102 = scmp.ne.s32.totalorder %s94, %s96
      %p103 = scmp.eq.s32.totalorder %s23, 1
      %p104 = por %p102, %p103
      %p105 = scmp.ne.s32.totalorder %s96, %s97
      %p106 = scmp.eq.s32.totalorder %s23, 0
      %p107 = por %p105, %p106
      %p108 = scmp.ne.s32.totalorder %s96, %s97
      %p109 = scmp.eq.s32.totalorder %s24, 1
      %p110 = por %p108, %p109
      %p112 = scmp.ne.s32.totalorder %s97, %s111
      %p113 = scmp.eq.s32.totalorder %s24, 0
      %p114 = por %p112, %p113
      %s116 = sadd.s32 %s115, 1
      %p119 = scmp.eq.s32.totalorder %s18, 1
      %p120 = scmp.ne.s32.totalorder %s115, %s117
      %p121 = scmp.eq.s32.totalorder %s18, 0
      %p122 = por %p120, %p121
      %p123 = scmp.ne.s32.totalorder %s115, %s117
      %p124 = scmp.eq.s32.totalorder %s23, 1
      %p125 = por %p123, %p124
      %p126 = scmp.ne.s32.totalorder %s117, %s118
      %p127 = scmp.eq.s32.totalorder %s23, 0
      %p128 = por %p126, %p127
      %p129 = scmp.ne.s32.totalorder %s117, %s118
      %p130 = scmp.eq.s32.totalorder %s24, 1
      %p131 = por %p129, %p130
      %p133 = scmp.ne.s32.totalorder %s118, %s132
      %p134 = scmp.eq.s32.totalorder %s24, 0
      %p135 = por %p133, %p134
      %s137 = sadd.s32 %s136, 1
      %p140 = scmp.eq.s32.totalorder %s18, 1
      %p141 = scmp.ne.s32.totalorder %s136, %s138
      %p142 = scmp.eq.s32.totalorder %s18, 0
      %p143 = por %p141, %p142
      %p144 = scmp.ne.s32.totalorder %s136, %s138
      %p145 = scmp.eq.s32.totalorder %s23, 1
      %p146 = por %p144, %p145
      %p147 = scmp.ne.s32.totalorder %s138, %s139
      %p148 = scmp.eq.s32.totalorder %s23, 0
      %p149 = por %p147, %p148
      %p150 = scmp.ne.s32.totalorder %s138, %s139
      %p151 = scmp.eq.s32.totalorder %s24, 1
      %p152 = por %p150, %p151
      %p154 = scmp.ne.s32.totalorder %s139, %s153
      %p155 = scmp.eq.s32.totalorder %s24, 0
      %p156 = por %p154, %p155
      %s158 = sadd.s32 %s157, 1
      %p161 = scmp.eq.s32.totalorder %s18, 1
      %p162 = scmp.ne.s32.totalorder %s157, %s159
      %p163 = scmp.eq.s32.totalorder %s18, 0
      %p164 = por %p162, %p163
      %p165 = scmp.ne.s32.totalorder %s157, %s159
      %p166 = scmp.eq.s32.totalorder %s23, 1
      %p167 = por %p165, %p166
      %p168 = scmp.ne.s32.totalorder %s159, %s160
      %p169 = scmp.eq.s32.totalorder %s23, 0
      %p170 = por %p168, %p169
      %p171 = scmp.ne.s32.totalorder %s159, %s160
      %p172 = scmp.eq.s32.totalorder %s24, 1
      %p173 = por %p171, %p172
      %p175 = scmp.ne.s32.totalorder %s160, %s174
      %p176 = scmp.eq.s32.totalorder %s24, 0
      %p177 = por %p175, %p176
      %s178 = ssub.s32 %s18, %s25
      %p179 = scmp.eq.s32.totalorder %s178, 0
      %s181 = sadd.s32 %s180, 1
      %s182 = scalar_select %p179, %s180, %s181
      %p185 = pneg %p179
      %p186 = scmp.eq.s32.totalorder %s18, 1
      %p187 = por %p185, %p186
      %p188 = scmp.ne.s32.totalorder %s180, %s183
      %p189 = scmp.eq.s32.totalorder %s18, 0
      %p190 = por %p188, %p189
      %p191 = scmp.ne.s32.totalorder %s180, %s183
      %p192 = scmp.eq.s32.totalorder %s23, 1
      %p193 = por %p191, %p192
      %p194 = scmp.ne.s32.totalorder %s183, %s184
      %p195 = scmp.eq.s32.totalorder %s23, 0
      %p196 = por %p194, %p195
      %p197 = scmp.ne.s32.totalorder %s183, %s184
      %p198 = scmp.eq.s32.totalorder %s24, 1
      %p199 = por %p197, %p198
      %p201 = scmp.ne.s32.totalorder %s184, %s200
      %p202 = scmp.eq.s32.totalorder %s24, 0
      %p203 = por %p201, %p202
      %p204 = scmp.le.s32.totalorder 1, %s18
      %p205 = scmp.lt.s32.totalorder %s18, 3
      %p206 = pnand %p204, %p205
      %p207 = pneg %p206
      // Predicated region
      $region9: #{_forward.1} parent=5 // pred_check
        _
      $region10: #{_forward.1} parent=5 // pred_check_branch
        %209 = sbr.rel (%p206) target = $region12
      $region11: #{_forward.1} parent=5 // pred_region
        %s210 = ssub.s32 %s18, 1
        // Predicated region
        $region13: #{_forward.1} parent=11 // pred_check
          %p211 = pneg %p65
        $region14: #{_forward.1} parent=11 // pred_check_branch
          %213 = sbr.rel (%p211) target = $region16
        $region15: #{_forward.1} parent=11 // pred_region
          %215 = vsyncadd [#allocation5], 0
          %s216 = sshll.u32 %s1, 4
          %s217 = int_to_ptr.hbm [resolvable:$true] %s216
          %s218 = sshll.u32 [#allocation4], 4
          %s219 = int_to_ptr.vmem [resolvable:$true] %s218
          %224 = dma.hbm_to_vmem [thread:$0]  %s217, 256, %s219, [#allocation5], 64, 64, 4
        $region16: #{_forward.1} parent=11 // pred_fallthru
          _
        // Predicated region
        $region17: #{_forward.1} parent=11 // pred_check
          %p225 = pneg %p86
        $region18: #{_forward.1} parent=11 // pred_check_branch
          %227 = sbr.rel (%p225) target = $region20
        $region19: #{_forward.1} parent=11 // pred_region
          _
        $region20: #{_forward.1} parent=11 // pred_fallthru
          _
        // Predicated region
        $region21: #{_forward.1} parent=11 // pred_check
          %p228 = pneg %p107
        $region22: #{_forward.1} parent=11 // pred_check_branch
          %230 = sbr.rel (%p228) target = $region24
        $region23: #{_forward.1} parent=11 // pred_region
          %232 = vsyncadd [#allocation5], 0
          %s233 = sshll.u32 %s3, 4
          %s234 = int_to_ptr.hbm [resolvable:$true] %s233
          %s235 = sshll.u32 [#allocation6], 4
          %s236 = int_to_ptr.vmem [resolvable:$true] %s235
          %241 = dma.hbm_to_vmem [thread:$0]  %s234, 1024, %s236, [#allocation5], 64, 64, 4
        $region24: #{_forward.1} parent=11 // pred_fallthru
          _
        // Predicated region
        $region25: #{_forward.1} parent=11 // pred_check
          %p242 = pneg %p128
        $region26: #{_forward.1} parent=11 // pred_check_branch
          %244 = sbr.rel (%p242) target = $region28
        $region27: #{_forward.1} parent=11 // pred_region
          _
        $region28: #{_forward.1} parent=11 // pred_fallthru
          _
        // Predicated region
        $region29: #{_forward.1} parent=11 // pred_check
          %p245 = pneg %p149
        $region30: #{_forward.1} parent=11 // pred_check_branch
          %247 = sbr.rel (%p245) target = $region32
        $region31: #{_forward.1} parent=11 // pred_region
          %249 = vsyncadd [#allocation8], 0
          %s250 = sshll.u32 %s5, 4
          %s251 = int_to_ptr.hbm [resolvable:$true] %s250
          %s252 = sshll.u32 [#allocation7], 4
          %s253 = int_to_ptr.vmem [resolvable:$true] %s252
          %258 = dma.hbm_to_vmem [thread:$0]  %s251, 1024, %s253, [#allocation8], 64, 64, 4
        $region32: #{_forward.1} parent=11 // pred_fallthru
          _
        // Predicated region
        $region33: #{_forward.1} parent=11 // pred_check
          %p259 = pneg %p170
        $region34: #{_forward.1} parent=11 // pred_check_branch
          %261 = sbr.rel (%p259) target = $region36
        $region35: #{_forward.1} parent=11 // pred_region
          _
        $region36: #{_forward.1} parent=11 // pred_fallthru
          _
      $region12: #{_forward.1} parent=5 // pred_fallthru
        _
      %p262 = scmp.lt.s32.totalorder %s18, 2
      // Predicated region
      $region37: #{_forward.1} parent=5 // pred_check
        %p263 = pneg %p262
      $region38: #{_forward.1} parent=5 // pred_check_branch
        %265 = sbr.rel (%p263) target = $region40
      $region39: #{_forward.1} parent=5 // pred_region
        // Predicated region
        $region41: #{_forward.1} parent=39 // pred_check
          %p266 = pneg %p38
        $region42: #{_forward.1} parent=39 // pred_check_branch
          %268 = sbr.rel (%p266) target = $region44
        $region43: #{_forward.1} parent=39 // pred_region
          %s269 = sand.u32 %s28, 1
          %s270 = scalar_lea.sflag [#allocation3], %s269
          %s271 = sand.u32 %s28, 1
          %s272 = smul.addr %s271, 8
          %s273 = scalar_lea.vmem [#allocation2], %s272
          %275 = vsyncadd %s270, 0
          %s276 = smul.addr %s18, 8
          %s277 = scalar_lea.hbm %s0, %s276
          %s279 = sshll.u32 %s277, 4
          %s280 = int_to_ptr.hbm [resolvable:$true] %s279
          %s281 = sshll.u32 %s273, 4
          %s282 = int_to_ptr.vmem [resolvable:$true] %s281
          %284 = dma.hbm_to_vmem [thread:$0]  %s280, 128, %s282, %s270
        $region44: #{_forward.1} parent=39 // pred_fallthru
          _
      $region40: #{_forward.1} parent=5 // pred_fallthru
        _
      %p285 = scmp.le.s32.totalorder 1, %s18
      %p286 = scmp.lt.s32.totalorder %s18, 3
      %p287 = pnand %p285, %p286
      %p288 = pneg %p287
      // Predicated region
      $region45: #{_forward.1} parent=5 // pred_check
        _
      $region46: #{_forward.1} parent=5 // pred_check_branch
        %290 = sbr.rel (%p287) target = $region48
      $region47: #{_forward.1} parent=5 // pred_region
        %s291 = ssub.s32 %s18, 1
        %s292 = sand.u32 %s31, 1
        %s293 = scalar_lea.sflag [#allocation3], %s292
        %s294 = sand.u32 %s31, 1
        %s295 = smul.addr %s294, 8
        %s296 = scalar_lea.vmem [#allocation2], %s295
        // Predicated region
        $region49: #{_forward.1} parent=47 // pred_check
          %p297 = pneg %p44
        $region50: #{_forward.1} parent=47 // pred_check_branch
          %299 = sbr.rel (%p297) target = $region52
        $region51: #{_forward.1} parent=47 // pred_region
          %301 = dma.done %s293, 128
        $region52: #{_forward.1} parent=47 // pred_fallthru
          _
        // Predicated region
        $region53: #{_forward.1} parent=47 // pred_check
          %p302 = pneg %p65
        $region54: #{_forward.1} parent=47 // pred_check_branch
          %304 = sbr.rel (%p302) target = $region56
        $region55: #{_forward.1} parent=47 // pred_region
          %306 = dma.done [#allocation5], 256
        $region56: #{_forward.1} parent=47 // pred_fallthru
          _
        // Predicated region
        $region57: #{_forward.1} parent=47 // pred_check
          %p307 = pneg %p107
        $region58: #{_forward.1} parent=47 // pred_check_branch
          %309 = sbr.rel (%p307) target = $region60
        $region59: #{_forward.1} parent=47 // pred_region
          %311 = dma.done [#allocation5], 1024
        $region60: #{_forward.1} parent=47 // pred_fallthru
          _
        // Predicated region
        $region61: #{_forward.1} parent=47 // pred_check
          %p312 = pneg %p149
        $region62: #{_forward.1} parent=47 // pred_check_branch
          %314 = sbr.rel (%p312) target = $region64
        $region63: #{_forward.1} parent=47 // pred_region
          %316 = dma.done [#allocation8], 1024
        $region64: #{_forward.1} parent=47 // pred_fallthru
          _
        %s317 = sand.u32 %s31, 1
        %s318 = scalar_lea.sflag [#allocation3], %s317
        %s319 = sand.u32 %s31, 1
        %s320 = smul.addr %s319, 8
        %s321 = scalar_lea.vmem [#allocation2], %s320
        %p322 = pneg %p44
        %p323 = pneg %p41
        %p324 = pneg %p65
        %p325 = pneg %p62
        %p326 = pneg %p86
        %p327 = pneg %p83
        %p328 = pneg %p107
        %p329 = pneg %p104
        %p330 = pneg %p128
        %p331 = pneg %p125
        %p332 = pneg %p149
        %p333 = pneg %p146
        %p334 = pneg %p170
        %p335 = pneg %p167
        %p336 = pneg %p196
        %p337 = pneg %p193
        %p338 = scmp.lt.s32.totalorder %s23, 1
        %s339 = scalar_select %p338, %s23, 1
        %s340 = smul.addr %s339, 8
        %s341 = scalar_lea.vmem %s7, %s340
        %p342 = scmp.lt.s32.totalorder %s23, 1
        %s343 = scalar_select %p342, %s23, 1
        %s344 = smul.addr %s343, 8
        %s345 = scalar_lea.vmem %s7, %s344
        %v347 = vld [vmem:[%s296] sm:$0xff]
        %v348 = vld [vmem:[#allocation4] sm:$0xf]
        %v349 = vld [vmem:[#allocation4 + $0x4] sm:$0xf]
        %v350 = vld [vmem:[#allocation4 + $0x8] sm:$0xf]
        %v351 = vld [vmem:[#allocation4 + $0xc] sm:$0xf]
        %v352 = vld [vmem:[%s2] sm:$0x1]
        %v353 = vpack.c.bf16 %v347, %v347
        %v355 = vperm.slane %v352, 0
        %v361 = vunpack.c.l.b16 %v348
        %v362 = vunpack.c.l.b16 %v349
        %v363 = vunpack.c.l.b16 %v350
        %v364 = vunpack.c.l.b16 %v351
        %v365 = vpack.c.b16 %v362, %v361
        %v366 = vpack.c.b16 %v364, %v363
        %vm369 = vcmask 261120
        %v371 = vsel %vm369, %v353, 0
        %373 = vmatpush.bf16.msra.mxu0 0
        %374 = vmatpush.bf16.msra.mxu0 0
        %375 = vmatpush.bf16.msra.mxu0 0
        %376 = vmatpush.bf16.msra.mxu0 0
        %377 = vmatpush.bf16.msra.mxu0 0
        %378 = vmatpush.bf16.msra.mxu0 0
        %379 = vmatpush.bf16.msra.mxu0 %v366
        %380 = vmatpush.bf16.msra.mxu0 %v365
        %381 = vmatmul.bf16.gmra.mxu0 %v371
        %v382 = vpop.f32.mrf.mxu0
        %v383 = vadd.f32 %v355, %v382
        %v384 = vpop.f32.mrf.mxu0
        %385 = vdwg.mxu0
        %v386 = vmax.f32 %v383, 0.0
        %v387 = vld [vmem:[#allocation6] sm:$0xf]
        %v388 = vld [vmem:[#allocation6 + $0x4] sm:$0xf]
        %v389 = vld [vmem:[#allocation6 + $0x8] sm:$0xf]
        %v390 = vld [vmem:[#allocation6 + $0xc] sm:$0xf]
        %v391 = vld [vmem:[#allocation6 + $0x10] sm:$0xf]
        %v392 = vld [vmem:[#allocation6 + $0x14] sm:$0xf]
        %v393 = vld [vmem:[#allocation6 + $0x18] sm:$0xf]
        %v394 = vld [vmem:[#allocation6 + $0x1c] sm:$0xf]
        %v395 = vld [vmem:[#allocation6 + $0x20] sm:$0xf]
        %v396 = vld [vmem:[#allocation6 + $0x24] sm:$0xf]
        %v397 = vld [vmem:[#allocation6 + $0x28] sm:$0xf]
        %v398 = vld [vmem:[#allocation6 + $0x2c] sm:$0xf]
        %v399 = vld [vmem:[#allocation6 + $0x30] sm:$0xf]
        %v400 = vld [vmem:[#allocation6 + $0x34] sm:$0xf]
        %v401 = vld [vmem:[#allocation6 + $0x38] sm:$0xf]
        %v402 = vld [vmem:[#allocation6 + $0x3c] sm:$0xf]
        %v403 = vld [vmem:[%s4] sm:$0x1]
        %v404 = vpack.c.bf16 %v386, %v386
        %v406 = vperm.slane %v403, 0
        %v424 = vunpack.c.l.b16 %v387
        %v425 = vunpack.c.l.b16 %v388
        %v426 = vunpack.c.l.b16 %v389
        %v427 = vunpack.c.l.b16 %v390
        %v428 = vunpack.c.l.b16 %v391
        %v429 = vunpack.c.l.b16 %v392
        %v430 = vunpack.c.l.b16 %v393
        %v431 = vunpack.c.l.b16 %v394
        %v432 = vunpack.c.l.b16 %v395
        %v433 = vunpack.c.l.b16 %v396
        %v434 = vunpack.c.l.b16 %v397
        %v435 = vunpack.c.l.b16 %v398
        %v436 = vunpack.c.l.b16 %v399
        %v437 = vunpack.c.l.b16 %v400
        %v438 = vunpack.c.l.b16 %v401
        %v439 = vunpack.c.l.b16 %v402
        %v440 = vpack.c.b16 %v425, %v424
        %v441 = vpack.c.b16 %v427, %v426
        %v442 = vpack.c.b16 %v429, %v428
        %v443 = vpack.c.b16 %v431, %v430
        %v444 = vpack.c.b16 %v433, %v432
        %v445 = vpack.c.b16 %v435, %v434
        %v446 = vpack.c.b16 %v437, %v436
        %v447 = vpack.c.b16 %v439, %v438
        %456 = vmatpush.bf16.msra.mxu0 %v447
        %457 = vmatpush.bf16.msra.mxu0 %v446
        %458 = vmatpush.bf16.msra.mxu0 %v445
        %459 = vmatpush.bf16.msra.mxu0 %v444
        %460 = vmatpush.bf16.msra.mxu0 %v443
        %461 = vmatpush.bf16.msra.mxu0 %v442
        %462 = vmatpush.bf16.msra.mxu0 %v441
        %463 = vmatpush.bf16.msra.mxu0 %v440
        %464 = vmatmul.bf16.gmra.mxu0 %v404
        %v465 = vpop.f32.mrf.mxu0
        %v466 = vadd.f32 %v406, %v465
        %v467 = vpop.f32.mrf.mxu0
        %468 = vdwg.mxu0
        %v469 = vmax.f32 %v466, 0.0
        %v470 = vld [vmem:[#allocation7] sm:$0xf]
        %v471 = vld [vmem:[#allocation7 + $0x4] sm:$0xf]
        %v472 = vld [vmem:[#allocation7 + $0x8] sm:$0xf]
        %v473 = vld [vmem:[#allocation7 + $0xc] sm:$0xf]
        %v474 = vld [vmem:[#allocation7 + $0x10] sm:$0xf]
        %v475 = vld [vmem:[#allocation7 + $0x14] sm:$0xf]
        %v476 = vld [vmem:[#allocation7 + $0x18] sm:$0xf]
        %v477 = vld [vmem:[#allocation7 + $0x1c] sm:$0xf]
        %v478 = vld [vmem:[#allocation7 + $0x20] sm:$0xf]
        %v479 = vld [vmem:[#allocation7 + $0x24] sm:$0xf]
        %v480 = vld [vmem:[#allocation7 + $0x28] sm:$0xf]
        %v481 = vld [vmem:[#allocation7 + $0x2c] sm:$0xf]
        %v482 = vld [vmem:[#allocation7 + $0x30] sm:$0xf]
        %v483 = vld [vmem:[#allocation7 + $0x34] sm:$0xf]
        %v484 = vld [vmem:[#allocation7 + $0x38] sm:$0xf]
        %v485 = vld [vmem:[#allocation7 + $0x3c] sm:$0xf]
        %v486 = vld [vmem:[%s6] sm:$0x1]
        %v487 = vpack.c.bf16 %v469, %v469
        %v489 = vperm.slane %v486, 0
        %v507 = vunpack.c.l.b16 %v470
        %v508 = vunpack.c.l.b16 %v471
        %v509 = vunpack.c.l.b16 %v472
        %v510 = vunpack.c.l.b16 %v473
        %v511 = vunpack.c.l.b16 %v474
        %v512 = vunpack.c.l.b16 %v475
        %v513 = vunpack.c.l.b16 %v476
        %v514 = vunpack.c.l.b16 %v477
        %v515 = vunpack.c.l.b16 %v478
        %v516 = vunpack.c.l.b16 %v479
        %v517 = vunpack.c.l.b16 %v480
        %v518 = vunpack.c.l.b16 %v481
        %v519 = vunpack.c.l.b16 %v482
        %v520 = vunpack.c.l.b16 %v483
        %v521 = vunpack.c.l.b16 %v484
        %v522 = vunpack.c.l.b16 %v485
        %v523 = vpack.c.b16 %v508, %v507
        %v524 = vpack.c.b16 %v510, %v509
        %v525 = vpack.c.b16 %v512, %v511
        %v526 = vpack.c.b16 %v514, %v513
        %v527 = vpack.c.b16 %v516, %v515
        %v528 = vpack.c.b16 %v518, %v517
        %v529 = vpack.c.b16 %v520, %v519
        %v530 = vpack.c.b16 %v522, %v521
        %539 = vmatpush.bf16.msra.mxu0 %v530
        %540 = vmatpush.bf16.msra.mxu0 %v529
        %541 = vmatpush.bf16.msra.mxu0 %v528
        %542 = vmatpush.bf16.msra.mxu0 %v527
        %543 = vmatpush.bf16.msra.mxu0 %v526
        %544 = vmatpush.bf16.msra.mxu0 %v525
        %545 = vmatpush.bf16.msra.mxu0 %v524
        %546 = vmatpush.bf16.msra.mxu0 %v523
        %547 = vmatmul.bf16.gmra.mxu0 %v487
        %v548 = vpop.f32.mrf.mxu0
        %v549 = vadd.f32 %v489, %v548
        %v550 = vpop.f32.mrf.mxu0
        %551 = vdwg.mxu0
        %552 = vst [vmem:[%s345] sm:$0xff] %v549
        %p553 = scmp.lt.s32.totalorder %s23, 1
        %s554 = scalar_select %p553, %s23, 1
        %s555 = smul.addr %s554, 8
        %s556 = scalar_lea.vmem %s7, %s555
        // Predicated region
        $region65: #{_forward.1} parent=47 // pred_check
          %p557 = pneg %p193
        $region66: #{_forward.1} parent=47 // pred_check_branch
          %559 = sbr.rel (%p557) target = $region68
        $region67: #{_forward.1} parent=47 // pred_region
          _
        $region68: #{_forward.1} parent=47 // pred_fallthru
          _
      $region48: #{_forward.1} parent=5 // pred_fallthru
        _
      %p560 = scmp.le.s32.totalorder 2, %s18
      // Predicated region
      $region69: #{_forward.1} parent=5 // pred_check
        %p561 = pneg %p560
      $region70: #{_forward.1} parent=5 // pred_check_branch
        %563 = sbr.rel (%p561) target = $region72
      $region71: #{_forward.1} parent=5 // pred_region
        %s564 = ssub.s32 %s18, 2
        // Predicated region
        $region73: #{_forward.1} parent=71 // pred_check
          %p565 = pneg %p199
        $region74: #{_forward.1} parent=71 // pred_check_branch
          %567 = sbr.rel (%p565) target = $region76
        $region75: #{_forward.1} parent=71 // pred_region
          %p568 = scmp.lt.s32.totalorder %s24, 1
          %s569 = scalar_select %p568, %s24, 1
          %s570 = smul.addr %s569, 8
          %s571 = scalar_lea.vmem %s7, %s570
        $region76: #{_forward.1} parent=71 // pred_fallthru
          _
      $region72: #{_forward.1} parent=5 // pred_fallthru
        _
    $region6: #{_forward.1} parent=1 // loop_footer
      %s22 = sadd.s32 1, %s18
    $region7: #{_forward.1} parent=1 // loop_footer_branch
      %17 = sbr.rel target = $region3
    $region8: #{_forward.1} parent=1 // loop_exit
      _
    %572 = vsyncpa [#allocation3], 1
    %s573 = scalar_lea.sflag [#allocation3], 1
    %574 = vsyncpa %s573, 1
    %575 = vsyncpa [#allocation5], 1
    %576 = vsyncpa [#allocation8], 1

// kernel: _forward.1
$region0: #{_forward.1}
  #allocation0 [shape = 'u32[]', space=smem, size = 0x4, offset = 0x4, fixed_abs, tag = 'smem constant byte address 0x4 - core index']
  #allocation1 [shape = 'u32[72,128]{1,0:T(1,128)}', space=vmem, size = 0x9000, scoped, tag = 'internal scratch']
  %s0 = inlined_call_operand.hbm [shape: f32[16,32], index: 0, kind: input, shape index: {}]
  %s1 = inlined_call_operand.hbm [shape: bf16[32,128], index: 1, kind: input, shape index: {}]
  %s2 = inlined_call_operand.vmem [shape: f32[1,128], index: 2, kind: input, shape index: {}]
  %s3 = inlined_call_operand.hbm [shape: bf16[128,128], index: 3, kind: input, shape index: {}]
  %s4 = inlined_call_operand.vmem [shape: f32[1,128], index: 4, kind: input, shape index: {}]
  %s5 = inlined_call_operand.hbm [shape: bf16[128,128], index: 5, kind: input, shape index: {}]
  %s6 = inlined_call_operand.vmem [shape: f32[1,128], index: 6, kind: input, shape index: {}]
  %s7 = inlined_call_operand.vmem [shape: f32[16,128], index: 7, kind: output, shape index: {}]
  %s8 = sld [smem:[#allocation0]]
  $region77: #{_forward.1} parent=0
    _
  %s10 = ssub.s32 1, %s8
  %s11 = scalar_select 0, %s10, %s8
  $region1: #{_forward.1} parent=0
    #allocation2 [shape = 'u8[8192]{0}', space=vmem, size = 0x2000, scoped, tag = 'input window, operand 0']
    #allocation3 [shape = 's32[2]{0}', space=sflag, size = 0x8, scoped, tag = 'scoped memory for _forward.1']
    #allocation4 [shape = 'u8[8192]{0}', space=vmem, size = 0x2000, scoped, tag = 'input window, operand 1, single buffered']
    #allocation5 [shape = 's32[1]{0}', space=sflag, size = 0x4, scoped, tag = 'scoped memory for _forward.1']
    #allocation6 [shape = 'u8[32768]{0}', space=vmem, size = 0x8000, scoped, tag = 'input window, operand 3, single buffered']
    #allocation7 [shape = 'u8[32768]{0}', space=vmem, size = 0x8000, scoped, tag = 'input window, operand 5, single buffered']
    #allocation8 [shape = 's32[1]{0}', space=sflag, size = 0x4, scoped, tag = 'scoped memory for _forward.1']
    %12 = vsyncpa [#allocation3], 0
    %s13 = scalar_lea.sflag [#allocation3], 1
    %14 = vsyncpa %s13, 0
    %15 = vsyncpa [#allocation5], 0
    %16 = vsyncpa [#allocation8], 0
    loop: start=0, step=1, limit=4
    $region2: #{_forward.1} parent=1 // loop_pre_header
      _
    $region3: #{_forward.1} parent=1 // loop_header
      %s18 = sphi 0, %s22
      %p19 = scmp.ge.s32.totalorder %s18, 4
      %s28 = sphi 0, %s30
      %s31 = sphi 0, %s28
      %s32 = sphi 0, %s31
      %s48 = sphi 0, %s32
      %s52 = sphi 0, %s52
      %s54 = sphi 0, %s52
      %s55 = sphi 0, %s54
      %s69 = sphi 0, %s55
      %s73 = sphi 0, %s73
      %s75 = sphi 0, %s73
      %s76 = sphi 0, %s75
      %s90 = sphi 0, %s76
      %s94 = sphi 0, %s94
      %s96 = sphi 0, %s94
      %s97 = sphi 0, %s96
      %s111 = sphi 0, %s97
      %s115 = sphi 0, %s115
      %s117 = sphi 0, %s115
      %s118 = sphi 0, %s117
      %s132 = sphi 0, %s118
      %s136 = sphi 0, %s136
      %s138 = sphi 0, %s136
      %s139 = sphi 0, %s138
      %s153 = sphi 0, %s139
      %s157 = sphi 0, %s157
      %s159 = sphi 0, %s157
      %s160 = sphi 0, %s159
      %s174 = sphi 0, %s160
      %s180 = sphi 0, %s182
      %s183 = sphi 0, %s180
      %s184 = sphi 0, %s183
      %s200 = sphi 0, %s184
    $region4: #{_forward.1} parent=1 // loop_header_branch
      %21 = sbr.rel (%p19) target = $region8
    $region5: #{_forward.1} parent=1 // loop_body
      %s23 = ssub.s32 %s18, 1
      %s24 = ssub.s32 %s18, 2
      %s25 = sadd.s32 %s18, 1
      %s26 = ssub.s32 %s18, %s25
      %p27 = scmp.eq.s32.totalorder %s26, 0
      %s29 = sadd.s32 %s28, 1
      %s30 = scalar_select %p27, %s28, %s29
      %p33 = pneg %p27
      %p34 = scmp.eq.s32.totalorder %s18, 1
      %p35 = por %p33, %p34
      %p36 = scmp.ne.s32.totalorder %s28, %s31
      %p37 = scmp.eq.s32.totalorder %s18, 0
      %p38 = por %p36, %p37
      %p39 = scmp.ne.s32.totalorder %s28, %s31
      %p40 = scmp.eq.s32.totalorder %s23, 1
      %p41 = por %p39, %p40
      %p42 = scmp.ne.s32.totalorder %s31, %s32
      %p43 = scmp.eq.s32.totalorder %s23, 0
      %p44 = por %p42, %p43
      %p45 = scmp.ne.s32.totalorder %s31, %s32
      %p46 = scmp.eq.s32.totalorder %s24, 1
      %p47 = por %p45, %p46
      %p49 = scmp.ne.s32.totalorder %s32, %s48
      %p50 = scmp.eq.s32.totalorder %s24, 0
      %p51 = por %p49, %p50
      %s53 = sadd.s32 %s52, 1
      %p56 = scmp.eq.s32.totalorder %s18, 1
      %p57 = scmp.ne.s32.totalorder %s52, %s54
      %p58 = scmp.eq.s32.totalorder %s18, 0
      %p59 = por %p57, %p58
      %p60 = scmp.ne.s32.totalorder %s52, %s54
      %p61 = scmp.eq.s32.totalorder %s23, 1
      %p62 = por %p60, %p61
      %p63 = scmp.ne.s32.totalorder %s54, %s55
      %p64 = scmp.eq.s32.totalorder %s23, 0
      %p65 = por %p63, %p64
      %p66 = scmp.ne.s32.totalorder %s54, %s55
      %p67 = scmp.eq.s32.totalorder %s24, 1
      %p68 = por %p66, %p67
      %p70 = scmp.ne.s32.totalorder %s55, %s69
      %p71 = scmp.eq.s32.totalorder %s24, 0
      %p72 = por %p70, %p71
      %s74 = sadd.s32 %s73, 1
      %p77 = scmp.eq.s32.totalorder %s18, 1
      %p78 = scmp.ne.s32.totalorder %s73, %s75
      %p79 = scmp.eq.s32.totalorder %s18, 0
      %p80 = por %p78, %p79
      %p81 = scmp.ne.s32.totalorder %s73, %s75
      %p82 = scmp.eq.s32.totalorder %s23, 1
      %p83 = por %p81, %p82
      %p84 = scmp.ne.s32.totalorder %s75, %s76
      %p85 = scmp.eq.s32.totalorder %s23, 0
      %p86 = por %p84, %p85
      %p87 = scmp.ne.s32.totalorder %s75, %s76
      %p88 = scmp.eq.s32.totalorder %s24, 1
      %p89 = por %p87, %p88
      %p91 = scmp.ne.s32.totalorder %s76, %s90
      %p92 = scmp.eq.s32.totalorder %s24, 0
      %p93 = por %p91, %p92
      %s95 = sadd.s32 %s94, 1
      %p98 = scmp.eq.s32.totalorder %s18, 1
      %p99 = scmp.ne.s32.totalorder %s94, %s96
      %p100 = scmp.eq.s32.totalorder %s18, 0
      %p101 = por %p99, %p100
      %p102 = scmp.ne.s32.totalorder %s94, %s96
      %p103 = scmp.eq.s32.totalorder %s23, 1
      %p104 = por %p102, %p103
      %p105 = scmp.ne.s32.totalorder %s96, %s97
      %p106 = scmp.eq.s32.totalorder %s23, 0
      %p107 = por %p105, %p106
      %p108 = scmp.ne.s32.totalorder %s96, %s97
      %p109 = scmp.eq.s32.totalorder %s24, 1
      %p110 = por %p108, %p109
      %p112 = scmp.ne.s32.totalorder %s97, %s111
      %p113 = scmp.eq.s32.totalorder %s24, 0
      %p114 = por %p112, %p113
      %s116 = sadd.s32 %s115, 1
      %p119 = scmp.eq.s32.totalorder %s18, 1
      %p120 = scmp.ne.s32.totalorder %s115, %s117
      %p121 = scmp.eq.s32.totalorder %s18, 0
      %p122 = por %p120, %p121
      %p123 = scmp.ne.s32.totalorder %s115, %s117
      %p124 = scmp.eq.s32.totalorder %s23, 1
      %p125 = por %p123, %p124
      %p126 = scmp.ne.s32.totalorder %s117, %s118
      %p127 = scmp.eq.s32.totalorder %s23, 0
      %p128 = por %p126, %p127
      %p129 = scmp.ne.s32.totalorder %s117, %s118
      %p130 = scmp.eq.s32.totalorder %s24, 1
      %p131 = por %p129, %p130
      %p133 = scmp.ne.s32.totalorder %s118, %s132
      %p134 = scmp.eq.s32.totalorder %s24, 0
      %p135 = por %p133, %p134
      %s137 = sadd.s32 %s136, 1
      %p140 = scmp.eq.s32.totalorder %s18, 1
      %p141 = scmp.ne.s32.totalorder %s136, %s138
      %p142 = scmp.eq.s32.totalorder %s18, 0
      %p143 = por %p141, %p142
      %p144 = scmp.ne.s32.totalorder %s136, %s138
      %p145 = scmp.eq.s32.totalorder %s23, 1
      %p146 = por %p144, %p145
      %p147 = scmp.ne.s32.totalorder %s138, %s139
      %p148 = scmp.eq.s32.totalorder %s23, 0
      %p149 = por %p147, %p148
      %p150 = scmp.ne.s32.totalorder %s138, %s139
      %p151 = scmp.eq.s32.totalorder %s24, 1
      %p152 = por %p150, %p151
      %p154 = scmp.ne.s32.totalorder %s139, %s153
      %p155 = scmp.eq.s32.totalorder %s24, 0
      %p156 = por %p154, %p155
      %s158 = sadd.s32 %s157, 1
      %p161 = scmp.eq.s32.totalorder %s18, 1
      %p162 = scmp.ne.s32.totalorder %s157, %s159
      %p163 = scmp.eq.s32.totalorder %s18, 0
      %p164 = por %p162, %p163
      %p165 = scmp.ne.s32.totalorder %s157, %s159
      %p166 = scmp.eq.s32.totalorder %s23, 1
      %p167 = por %p165, %p166
      %p168 = scmp.ne.s32.totalorder %s159, %s160
      %p169 = scmp.eq.s32.totalorder %s23, 0
      %p170 = por %p168, %p169
      %p171 = scmp.ne.s32.totalorder %s159, %s160
      %p172 = scmp.eq.s32.totalorder %s24, 1
      %p173 = por %p171, %p172
      %p175 = scmp.ne.s32.totalorder %s160, %s174
      %p176 = scmp.eq.s32.totalorder %s24, 0
      %p177 = por %p175, %p176
      %s178 = ssub.s32 %s18, %s25
      %p179 = scmp.eq.s32.totalorder %s178, 0
      %s181 = sadd.s32 %s180, 1
      %s182 = scalar_select %p179, %s180, %s181
      %p185 = pneg %p179
      %p186 = scmp.eq.s32.totalorder %s18, 1
      %p187 = por %p185, %p186
      %p188 = scmp.ne.s32.totalorder %s180, %s183
      %p189 = scmp.eq.s32.totalorder %s18, 0
      %p190 = por %p188, %p189
      %p191 = scmp.ne.s32.totalorder %s180, %s183
      %p192 = scmp.eq.s32.totalorder %s23, 1
      %p193 = por %p191, %p192
      %p194 = scmp.ne.s32.totalorder %s183, %s184
      %p195 = scmp.eq.s32.totalorder %s23, 0
      %p196 = por %p194, %p195
      %p197 = scmp.ne.s32.totalorder %s183, %s184
      %p198 = scmp.eq.s32.totalorder %s24, 1
      %p199 = por %p197, %p198
      %p201 = scmp.ne.s32.totalorder %s184, %s200
      %p202 = scmp.eq.s32.totalorder %s24, 0
      %p203 = por %p201, %p202
      %p204 = scmp.le.s32.totalorder 1, %s18
      %p205 = scmp.lt.s32.totalorder %s18, 3
      %p206 = pnand %p204, %p205
      %p207 = pneg %p206
      // Predicated region
      $region9: #{_forward.1} parent=5 // pred_check
        _
      $region10: #{_forward.1} parent=5 // pred_check_branch
        %209 = sbr.rel (%p206) target = $region12
      $region11: #{_forward.1} parent=5 // pred_region
        %s210 = ssub.s32 %s18, 1
        // Predicated region
        $region13: #{_forward.1} parent=11 // pred_check
          %p211 = pneg %p65
        $region14: #{_forward.1} parent=11 // pred_check_branch
          %213 = sbr.rel (%p211) target = $region16
        $region15: #{_forward.1} parent=11 // pred_region
          %215 = vsyncadd [#allocation5], 0
          %s216 = sshll.u32 %s1, 4
          %s217 = int_to_ptr.hbm [resolvable:$true] %s216
          %s218 = sshll.u32 [#allocation4], 4
          %s219 = int_to_ptr.vmem [resolvable:$true] %s218
          %224 = dma.hbm_to_vmem [thread:$0]  %s217, 256, %s219, [#allocation5], 64, 64, 4
        $region16: #{_forward.1} parent=11 // pred_fallthru
          _
        // Predicated region
        $region17: #{_forward.1} parent=11 // pred_check
          %p225 = pneg %p86
        $region18: #{_forward.1} parent=11 // pred_check_branch
          %227 = sbr.rel (%p225) target = $region20
        $region19: #{_forward.1} parent=11 // pred_region
          _
        $region20: #{_forward.1} parent=11 // pred_fallthru
          _
        // Predicated region
        $region21: #{_forward.1} parent=11 // pred_check
          %p228 = pneg %p107
        $region22: #{_forward.1} parent=11 // pred_check_branch
          %230 = sbr.rel (%p228) target = $region24
        $region23: #{_forward.1} parent=11 // pred_region
          %232 = vsyncadd [#allocation5], 0
          %s233 = sshll.u32 %s3, 4
          %s234 = int_to_ptr.hbm [resolvable:$true] %s233
          %s235 = sshll.u32 [#allocation6], 4
          %s236 = int_to_ptr.vmem [resolvable:$true] %s235
          %241 = dma.hbm_to_vmem [thread:$0]  %s234, 1024, %s236, [#allocation5], 64, 64, 4
        $region24: #{_forward.1} parent=11 // pred_fallthru
          _
        // Predicated region
        $region25: #{_forward.1} parent=11 // pred_check
          %p242 = pneg %p128
        $region26: #{_forward.1} parent=11 // pred_check_branch
          %244 = sbr.rel (%p242) target = $region28
        $region27: #{_forward.1} parent=11 // pred_region
          _
        $region28: #{_forward.1} parent=11 // pred_fallthru
          _
        // Predicated region
        $region29: #{_forward.1} parent=11 // pred_check
          %p245 = pneg %p149
        $region30: #{_forward.1} parent=11 // pred_check_branch
          %247 = sbr.rel (%p245) target = $region32
        $region31: #{_forward.1} parent=11 // pred_region
          %249 = vsyncadd [#allocation8], 0
          %s250 = sshll.u32 %s5, 4
          %s251 = int_to_ptr.hbm [resolvable:$true] %s250
          %s252 = sshll.u32 [#allocation7], 4
          %s253 = int_to_ptr.vmem [resolvable:$true] %s252
          %258 = dma.hbm_to_vmem [thread:$0]  %s251, 1024, %s253, [#allocation8], 64, 64, 4
        $region32: #{_forward.1} parent=11 // pred_fallthru
          _
        // Predicated region
        $region33: #{_forward.1} parent=11 // pred_check
          %p259 = pneg %p170
        $region34: #{_forward.1} parent=11 // pred_check_branch
          %261 = sbr.rel (%p259) target = $region36
        $region35: #{_forward.1} parent=11 // pred_region
          _
        $region36: #{_forward.1} parent=11 // pred_fallthru
          _
      $region12: #{_forward.1} parent=5 // pred_fallthru
        _
      %p262 = scmp.lt.s32.totalorder %s18, 2
      // Predicated region
      $region37: #{_forward.1} parent=5 // pred_check
        %p263 = pneg %p262
      $region38: #{_forward.1} parent=5 // pred_check_branch
        %265 = sbr.rel (%p263) target = $region40
      $region39: #{_forward.1} parent=5 // pred_region
        // Predicated region
        $region41: #{_forward.1} parent=39 // pred_check
          %p266 = pneg %p38
        $region42: #{_forward.1} parent=39 // pred_check_branch
          %268 = sbr.rel (%p266) target = $region44
        $region43: #{_forward.1} parent=39 // pred_region
          %s269 = sand.u32 %s28, 1
          %s270 = scalar_lea.sflag [#allocation3], %s269
          %s271 = sand.u32 %s28, 1
          %s272 = smul.addr %s271, 8
          %s273 = scalar_lea.vmem [#allocation2], %s272
          %275 = vsyncadd %s270, 0
          %s276 = smul.addr %s18, 8
          %s277 = scalar_lea.hbm %s0, %s276
          %s279 = sshll.u32 %s277, 4
          %s280 = int_to_ptr.hbm [resolvable:$true] %s279
          %s281 = sshll.u32 %s273, 4
          %s282 = int_to_ptr.vmem [resolvable:$true] %s281
          %284 = dma.hbm_to_vmem [thread:$0]  %s280, 128, %s282, %s270
        $region44: #{_forward.1} parent=39 // pred_fallthru
          _
      $region40: #{_forward.1} parent=5 // pred_fallthru
        _
      %p285 = scmp.le.s32.totalorder 1, %s18
      %p286 = scmp.lt.s32.totalorder %s18, 3
      %p287 = pnand %p285, %p286
      %p288 = pneg %p287
      // Predicated region
      $region45: #{_forward.1} parent=5 // pred_check
        _
      $region46: #{_forward.1} parent=5 // pred_check_branch
        %290 = sbr.rel (%p287) target = $region48
      $region47: #{_forward.1} parent=5 // pred_region
        %s291 = ssub.s32 %s18, 1
        %s292 = sand.u32 %s31, 1
        %s293 = scalar_lea.sflag [#allocation3], %s292
        %s294 = sand.u32 %s31, 1
        %s295 = smul.addr %s294, 8
        %s296 = scalar_lea.vmem [#allocation2], %s295
        // Predicated region
        $region49: #{_forward.1} parent=47 // pred_check
          %p297 = pneg %p44
        $region50: #{_forward.1} parent=47 // pred_check_branch
          %299 = sbr.rel (%p297) target = $region52
        $region51: #{_forward.1} parent=47 // pred_region
          %301 = dma.done %s293, 128
        $region52: #{_forward.1} parent=47 // pred_fallthru
          _
        // Predicated region
        $region53: #{_forward.1} parent=47 // pred_check
          %p302 = pneg %p65
        $region54: #{_forward.1} parent=47 // pred_check_branch
          %304 = sbr.rel (%p302) target = $region56
        $region55: #{_forward.1} parent=47 // pred_region
          %306 = dma.done [#allocation5], 256
        $region56: #{_forward.1} parent=47 // pred_fallthru
          _
        // Predicated region
        $region57: #{_forward.1} parent=47 // pred_check
          %p307 = pneg %p107
        $region58: #{_forward.1} parent=47 // pred_check_branch
          %309 = sbr.rel (%p307) target = $region60
        $region59: #{_forward.1} parent=47 // pred_region
          %311 = dma.done [#allocation5], 1024
        $region60: #{_forward.1} parent=47 // pred_fallthru
          _
        // Predicated region
        $region61: #{_forward.1} parent=47 // pred_check
          %p312 = pneg %p149
        $region62: #{_forward.1} parent=47 // pred_check_branch
          %314 = sbr.rel (%p312) target = $region64
        $region63: #{_forward.1} parent=47 // pred_region
          %316 = dma.done [#allocation8], 1024
        $region64: #{_forward.1} parent=47 // pred_fallthru
          _
        %s317 = sand.u32 %s31, 1
        %s318 = scalar_lea.sflag [#allocation3], %s317
        %s319 = sand.u32 %s31, 1
        %s320 = smul.addr %s319, 8
        %s321 = scalar_lea.vmem [#allocation2], %s320
        %p322 = pneg %p44
        %p323 = pneg %p41
        %p324 = pneg %p65
        %p325 = pneg %p62
        %p326 = pneg %p86
        %p327 = pneg %p83
        %p328 = pneg %p107
        %p329 = pneg %p104
        %p330 = pneg %p128
        %p331 = pneg %p125
        %p332 = pneg %p149
        %p333 = pneg %p146
        %p334 = pneg %p170
        %p335 = pneg %p167
        %p336 = pneg %p196
        %p337 = pneg %p193
        %p338 = scmp.lt.s32.totalorder %s23, 1
        %s339 = scalar_select %p338, %s23, 1
        %s340 = smul.addr %s339, 8
        %s341 = scalar_lea.vmem %s7, %s340
        %p342 = scmp.lt.s32.totalorder %s23, 1
        %s343 = scalar_select %p342, %s23, 1
        %s344 = smul.addr %s343, 8
        %s345 = scalar_lea.vmem %s7, %s344
        %v347 = vld [vmem:[%s296] sm:$0xff]
        %v348 = vld [vmem:[#allocation4] sm:$0xf]
        %v349 = vld [vmem:[#allocation4 + $0x4] sm:$0xf]
        %v350 = vld [vmem:[#allocation4 + $0x8] sm:$0xf]
        %v351 = vld [vmem:[#allocation4 + $0xc] sm:$0xf]
        %v352 = vld [vmem:[%s2] sm:$0x1]
        %v353 = vpack.c.bf16 %v347, %v347
        %v355 = vperm.slane %v352, 0
        %v361 = vunpack.c.l.b16 %v348
        %v362 = vunpack.c.l.b16 %v349
        %v363 = vunpack.c.l.b16 %v350
        %v364 = vunpack.c.l.b16 %v351
        %v365 = vpack.c.b16 %v362, %v361
        %v366 = vpack.c.b16 %v364, %v363
        %vm369 = vcmask 261120
        %v371 = vsel %vm369, %v353, 0
        %373 = vmatpush.bf16.msra.mxu0 0
        %374 = vmatpush.bf16.msra.mxu0 0
        %375 = vmatpush.bf16.msra.mxu0 0
        %376 = vmatpush.bf16.msra.mxu0 0
        %377 = vmatpush.bf16.msra.mxu0 0
        %378 = vmatpush.bf16.msra.mxu0 0
        %379 = vmatpush.bf16.msra.mxu0 %v366
        %380 = vmatpush.bf16.msra.mxu0 %v365
        %381 = vmatmul.bf16.gmra.mxu0 %v371
        %v382 = vpop.f32.mrf.mxu0
        %v383 = vadd.f32 %v355, %v382
        %v384 = vpop.f32.mrf.mxu0
        %385 = vdwg.mxu0
        %v386 = vmax.f32 %v383, 0.0
        %v387 = vld [vmem:[#allocation6] sm:$0xf]
        %v388 = vld [vmem:[#allocation6 + $0x4] sm:$0xf]
        %v389 = vld [vmem:[#allocation6 + $0x8] sm:$0xf]
        %v390 = vld [vmem:[#allocation6 + $0xc] sm:$0xf]
        %v391 = vld [vmem:[#allocation6 + $0x10] sm:$0xf]
        %v392 = vld [vmem:[#allocation6 + $0x14] sm:$0xf]
        %v393 = vld [vmem:[#allocation6 + $0x18] sm:$0xf]
        %v394 = vld [vmem:[#allocation6 + $0x1c] sm:$0xf]
        %v395 = vld [vmem:[#allocation6 + $0x20] sm:$0xf]
        %v396 = vld [vmem:[#allocation6 + $0x24] sm:$0xf]
        %v397 = vld [vmem:[#allocation6 + $0x28] sm:$0xf]
        %v398 = vld [vmem:[#allocation6 + $0x2c] sm:$0xf]
        %v399 = vld [vmem:[#allocation6 + $0x30] sm:$0xf]
        %v400 = vld [vmem:[#allocation6 + $0x34] sm:$0xf]
        %v401 = vld [vmem:[#allocation6 + $0x38] sm:$0xf]
        %v402 = vld [vmem:[#allocation6 + $0x3c] sm:$0xf]
        %v403 = vld [vmem:[%s4] sm:$0x1]
        %v404 = vpack.c.bf16 %v386, %v386
        %v406 = vperm.slane %v403, 0
        %v424 = vunpack.c.l.b16 %v387
        %v425 = vunpack.c.l.b16 %v388
        %v426 = vunpack.c.l.b16 %v389
        %v427 = vunpack.c.l.b16 %v390
        %v428 = vunpack.c.l.b16 %v391
        %v429 = vunpack.c.l.b16 %v392
        %v430 = vunpack.c.l.b16 %v393
        %v431 = vunpack.c.l.b16 %v394
        %v432 = vunpack.c.l.b16 %v395
        %v433 = vunpack.c.l.b16 %v396
        %v434 = vunpack.c.l.b16 %v397
        %v435 = vunpack.c.l.b16 %v398
        %v436 = vunpack.c.l.b16 %v399
        %v437 = vunpack.c.l.b16 %v400
        %v438 = vunpack.c.l.b16 %v401
        %v439 = vunpack.c.l.b16 %v402
        %v440 = vpack.c.b16 %v425, %v424
        %v441 = vpack.c.b16 %v427, %v426
        %v442 = vpack.c.b16 %v429, %v428
        %v443 = vpack.c.b16 %v431, %v430
        %v444 = vpack.c.b16 %v433, %v432
        %v445 = vpack.c.b16 %v435, %v434
        %v446 = vpack.c.b16 %v437, %v436
        %v447 = vpack.c.b16 %v439, %v438
        %456 = vmatpush.bf16.msra.mxu0 %v447
        %457 = vmatpush.bf16.msra.mxu0 %v446
        %458 = vmatpush.bf16.msra.mxu0 %v445
        %459 = vmatpush.bf16.msra.mxu0 %v444
        %460 = vmatpush.bf16.msra.mxu0 %v443
        %461 = vmatpush.bf16.msra.mxu0 %v442
        %462 = vmatpush.bf16.msra.mxu0 %v441
        %463 = vmatpush.bf16.msra.mxu0 %v440
        %464 = vmatmul.bf16.gmra.mxu0 %v404
        %v465 = vpop.f32.mrf.mxu0
        %v466 = vadd.f32 %v406, %v465
        %v467 = vpop.f32.mrf.mxu0
        %468 = vdwg.mxu0
        %v469 = vmax.f32 %v466, 0.0
        %v470 = vld [vmem:[#allocation7] sm:$0xf]
        %v471 = vld [vmem:[#allocation7 + $0x4] sm:$0xf]
        %v472 = vld [vmem:[#allocation7 + $0x8] sm:$0xf]
        %v473 = vld [vmem:[#allocation7 + $0xc] sm:$0xf]
        %v474 = vld [vmem:[#allocation7 + $0x10] sm:$0xf]
        %v475 = vld [vmem:[#allocation7 + $0x14] sm:$0xf]
        %v476 = vld [vmem:[#allocation7 + $0x18] sm:$0xf]
        %v477 = vld [vmem:[#allocation7 + $0x1c] sm:$0xf]
        %v478 = vld [vmem:[#allocation7 + $0x20] sm:$0xf]
        %v479 = vld [vmem:[#allocation7 + $0x24] sm:$0xf]
        %v480 = vld [vmem:[#allocation7 + $0x28] sm:$0xf]
        %v481 = vld [vmem:[#allocation7 + $0x2c] sm:$0xf]
        %v482 = vld [vmem:[#allocation7 + $0x30] sm:$0xf]
        %v483 = vld [vmem:[#allocation7 + $0x34] sm:$0xf]
        %v484 = vld [vmem:[#allocation7 + $0x38] sm:$0xf]
        %v485 = vld [vmem:[#allocation7 + $0x3c] sm:$0xf]
        %v486 = vld [vmem:[%s6] sm:$0x1]
        %v487 = vpack.c.bf16 %v469, %v469
        %v489 = vperm.slane %v486, 0
        %v507 = vunpack.c.l.b16 %v470
        %v508 = vunpack.c.l.b16 %v471
        %v509 = vunpack.c.l.b16 %v472
        %v510 = vunpack.c.l.b16 %v473
        %v511 = vunpack.c.l.b16 %v474
        %v512 = vunpack.c.l.b16 %v475
        %v513 = vunpack.c.l.b16 %v476
        %v514 = vunpack.c.l.b16 %v477
        %v515 = vunpack.c.l.b16 %v478
        %v516 = vunpack.c.l.b16 %v479
        %v517 = vunpack.c.l.b16 %v480
        %v518 = vunpack.c.l.b16 %v481
        %v519 = vunpack.c.l.b16 %v482
        %v520 = vunpack.c.l.b16 %v483
        %v521 = vunpack.c.l.b16 %v484
        %v522 = vunpack.c.l.b16 %v485
        %v523 = vpack.c.b16 %v508, %v507
        %v524 = vpack.c.b16 %v510, %v509
        %v525 = vpack.c.b16 %v512, %v511
        %v526 = vpack.c.b16 %v514, %v513
        %v527 = vpack.c.b16 %v516, %v515
        %v528 = vpack.c.b16 %v518, %v517
        %v529 = vpack.c.b16 %v520, %v519
        %v530 = vpack.c.b16 %v522, %v521
        %539 = vmatpush.bf16.msra.mxu0 %v530
        %540 = vmatpush.bf16.msra.mxu0 %v529
        %541 = vmatpush.bf16.msra.mxu0 %v528
        %542 = vmatpush.bf16.msra.mxu0 %v527
        %543 = vmatpush.bf16.msra.mxu0 %v526
        %544 = vmatpush.bf16.msra.mxu0 %v525
        %545 = vmatpush.bf16.msra.mxu0 %v524
        %546 = vmatpush.bf16.msra.mxu0 %v523
        %547 = vmatmul.bf16.gmra.mxu0 %v487
        %v548 = vpop.f32.mrf.mxu0
        %v549 = vadd.f32 %v489, %v548
        %v550 = vpop.f32.mrf.mxu0
        %551 = vdwg.mxu0
        %552 = vst [vmem:[%s345] sm:$0xff] %v549
        %p553 = scmp.lt.s32.totalorder %s23, 1
        %s554 = scalar_select %p553, %s23, 1
        %s555 = smul.addr %s554, 8
        %s556 = scalar_lea.vmem %s7, %s555
        // Predicated region
        $region65: #{_forward.1} parent=47 // pred_check
          %p557 = pneg %p193
        $region66: #{_forward.1} parent=47 // pred_check_branch
          %559 = sbr.rel (%p557) target = $region68
        $region67: #{_forward.1} parent=47 // pred_region
          _
        $region68: #{_forward.1} parent=47 // pred_fallthru
          _
      $region48: #{_forward.1} parent=5 // pred_fallthru
        _
      %p560 = scmp.le.s32.totalorder 2, %s18
      // Predicated region
      $region69: #{_forward.1} parent=5 // pred_check
        %p561 = pneg %p560
      $region70: #{_forward.1} parent=5 // pred_check_branch
        %563 = sbr.rel (%p561) target = $region72
      $region71: #{_forward.1} parent=5 // pred_region
        %s564 = ssub.s32 %s18, 2
        // Predicated region
        $region73: #{_forward.1} parent=71 // pred_check
          %p565 = pneg %p199
        $region74: #{_forward.1} parent=71 // pred_check_branch
          %567 = sbr.rel (%p565) target = $region76
        $region75: #{_forward.1} parent=71 // pred_region
          %p568 = scmp.lt.s32.totalorder %s24, 1
          %s569 = scalar_select %p568, %s24, 1
          %s570 = smul.addr %s569, 8
          %s571 = scalar_lea.vmem %s7, %s570
        $region76: #{_forward.1} parent=71 // pred_fallthru
          _
      $region72: #{_forward.1} parent=5 // pred_fallthru
        _
    $region6: #{_forward.1} parent=1 // loop_footer
      %s22 = sadd.s32 1, %s18
    $region7: #{_forward.1} parent=1 // loop_footer_branch
      %17 = sbr.rel target = $region3
    $region8: #{_forward.1} parent=1 // loop_exit
      _
    %572 = vsyncpa [#allocation3], 1
    %s573 = scalar_lea.sflag [#allocation3], 1
    %574 = vsyncpa %s573, 1
    %575 = vsyncpa [#allocation5], 1
    %576 = vsyncpa [#allocation8], 1

</llo_original>
